<compile_context>
chip_gen: v6e
topology: v6e:2x2x1
jax: 0.10.0
libtpu: 0.0.40
codegen_flags: <defaults>
</compile_context>

<pallas_src>
import functools
import math

import jax
import jax.numpy as jnp
from jax.experimental import pallas as pl
from jax.experimental.pallas import tpu as pltpu

BN_EPS = 1e-5
ACT_DTYPE = jnp.bfloat16
_VMEM_LIMIT = 48 * 1024 * 1024   # worst-case working set here is ~20 MiB;
                                 # 48 MiB is safe on v7x (64 MiB physical)
_LANE_TARGET = 512               # target lane width for elementwise passes


# ---------------------------------------------------------------------------
# Tiling helpers
# ---------------------------------------------------------------------------
def _round_up(x, m):
    return ((x + m - 1) // m) * m


def _choose_m_tile(m, target):
    """Row tile (multiple of 8) and padded M (multiple of the tile).
    Guarantees >= 2 tiles whenever possible so both v7x TensorCores work."""
    tm = min(target, _round_up(m, 8))
    mpad = _round_up(m, tm)
    if mpad // tm == 1 and tm >= 16:
        tm = _round_up(tm // 2, 8)
        mpad = _round_up(m, tm)
    return tm, mpad


def _choose_rep(cout, tm):
    """Lane-packing factor: pack `rep` M-rows into the lane dim so the last
    dim of the elementwise pass is a large multiple of 128 (unmasked vst)."""
    rep = max(1, _LANE_TARGET // cout)
    while rep > 1 and tm % (8 * rep) != 0:
        rep //= 2
    return rep


def _full_spec(arr):
    nd = arr.ndim
    return pl.BlockSpec(arr.shape, lambda i, n=nd: (0,) * n)


# ---------------------------------------------------------------------------
# Pallas kernels
# ---------------------------------------------------------------------------
def _conv_stats_kernel(p_ref, w_ref, y_ref, st_ref):
    """Single-shot conv matmul for one M tile (full K resident in VMEM).
    Emits bf16 output plus per-tile BN partial sums from the f32 result."""
    y = jnp.dot(p_ref[...], w_ref[...], preferred_element_type=jnp.float32)
    y_ref[...] = y.astype(y_ref.dtype)
    c = y.shape[1]
    s = jnp.sum(y, axis=0, keepdims=True)            # (1, C)
    ss = jnp.sum(y * y, axis=0, keepdims=True)       # (1, C)
    row = jax.lax.broadcasted_iota(jnp.int32, (8, c), 0)
    st = jnp.where(row == 0, s, jnp.where(row == 1, ss, 0.0))
    st_ref[...] = st[None]                           # (1, 8, C)


def _bn_act_kernel(y_ref, s_ref, b_ref, o_ref, *, relu):
    y = y_ref[...].astype(jnp.float32) * s_ref[...] + b_ref[...]
    if relu:
        y = jnp.maximum(y, 0.0)
    o_ref[...] = y.astype(o_ref.dtype)


def _bn_act_add_kernel(y_ref, r_ref, s_ref, b_ref, o_ref, *, relu):
    y = y_ref[...].astype(jnp.float32) * s_ref[...] + b_ref[...]
    if relu:
        y = jnp.maximum(y, 0.0)
    # Residual added AFTER ReLU, no ReLU after the add (matches the reference
    # BasicBlock:  out = relu(bn2(conv2)); out += residual).
    o_ref[...] = (y + r_ref[...].astype(jnp.float32)).astype(o_ref.dtype)


def _tap_max_kernel(x_ref, o_ref):
    # x_ref: [T, TM, L] window taps; elementwise max over taps.
    y = x_ref[0]
    for t in range(1, x_ref.shape[0]):
        y = jnp.maximum(y, x_ref[t])
    o_ref[...] = y


def _head_kernel(x_ref, w_ref, b_ref, o_ref):
    # x_ref: [N, H*W, C]  ->  adaptive avg pool (1,1) + fully-connected.
    x = x_ref[...].astype(jnp.float32)
    pooled = jnp.mean(x, axis=1)                     # [N, C]
    o_ref[...] = jnp.dot(pooled, w_ref[...],
                         preferred_element_type=jnp.float32) + b_ref[...]


# ---------------------------------------------------------------------------
# Wrappers (glue: padding / im2col / bitcast reshapes stay in plain JAX)
# ---------------------------------------------------------------------------
def _im2col(x, kh, kw, stride, pad):
    n, h, w, c = x.shape
    xp = jnp.pad(x, ((0, 0), (pad, pad), (pad, pad), (0, 0)))
    ho = (h + 2 * pad - kh) // stride + 1
    wo = (w + 2 * pad - kw) // stride + 1
    taps = []
    for i in range(kh):
        for j in range(kw):
            taps.append(xp[:, i:i + stride * ho:stride, j:j + stride * wo:stride, :])
    patches = jnp.stack(taps, axis=3)                # [N, Ho, Wo, KH*KW, C]
    return patches.reshape(n * ho * wo, kh * kw * c), ho, wo


def conv_bn(x, w_hwio, gamma, beta, *, stride, pad, relu, residual=None):
    n = x.shape[0]
    kh, kw, cin, cout = w_hwio.shape
    patches, ho, wo = _im2col(x, kh, kw, stride, pad)
    m = n * ho * wo
    kdim = kh * kw * cin
    kpad = _round_up(kdim, 128)       # zero-pad K so loads are lane-aligned

    tm_target = 512 if kpad > 2560 else 1024
    tm, mpad = _choose_m_tile(m, tm_target)
    mt = mpad // tm

    patches = patches.astype(ACT_DTYPE)
    if mpad != m or kpad != kdim:
        # zero rows/cols contribute nothing to the matmul nor to the BN sums
        # (valid only because the conv has no bias).
        patches = jnp.pad(patches, ((0, mpad - m), (0, kpad - kdim)))
    w_mat = w_hwio.reshape(kdim, cout).astype(ACT_DTYPE)
    if kpad != kdim:
        w_mat = jnp.pad(w_mat, ((0, kpad - kdim), (0, 0)))

    y, stats = pl.pallas_call(
        _conv_stats_kernel,
        grid=(mt,),
        in_specs=[
            pl.BlockSpec((tm, kpad), lambda i: (i, 0)),
            # Constant index -> weight DMA'd once, VMEM-resident across tiles.
            pl.BlockSpec((kpad, cout), lambda i: (0, 0)),
        ],
        out_specs=[
            pl.BlockSpec((tm, cout), lambda i: (i, 0)),
            pl.BlockSpec((1, 8, cout), lambda i: (i, 0, 0)),
        ],
        out_shape=[
            jax.ShapeDtypeStruct((mpad, cout), ACT_DTYPE),
            jax.ShapeDtypeStruct((mt, 8, cout), jnp.float32),
        ],
        compiler_params=pltpu.CompilerParams(
            dimension_semantics=("parallel",),
            vmem_limit_bytes=_VMEM_LIMIT),
    )(patches, w_mat)

    # Tiny per-channel glue: batch statistics -> scale / shift (training BN).
    tot = jnp.sum(stats[:, 0, :], axis=0)
    tot_sq = jnp.sum(stats[:, 1, :], axis=0)
    mean = tot / m
    var = jnp.maximum(tot_sq / m - mean * mean, 0.0)
    inv = jax.lax.rsqrt(var + BN_EPS)
    scale = (gamma * inv).reshape(1, cout).astype(jnp.float32)
    bias = (beta - mean * gamma * inv).reshape(1, cout).astype(jnp.float32)

    # Lane-dense elementwise pass: pack `rep` rows into the lane dim.
    rep = _choose_rep(cout, tm)
    lane_w = cout * rep
    tmb = tm // rep
    y2 = y.reshape(mpad // rep, lane_w)              # free bitcast reshape
    if rep > 1:
        scale = jnp.tile(scale, (1, rep))
        bias = jnp.tile(bias, (1, rep))

    if residual is None:
        kernel = functools.partial(_bn_act_kernel, relu=relu)
        in_specs = [
            pl.BlockSpec((tmb, lane_w), lambda i: (i, 0)),
            pl.BlockSpec((1, lane_w), lambda i: (0, 0)),
            pl.BlockSpec((1, lane_w), lambda i: (0, 0)),
        ]
        args = (y2, scale, bias)
    else:
        r = residual.reshape(m, cout).astype(ACT_DTYPE)
        if mpad != m:
            r = jnp.pad(r, ((0, mpad - m), (0, 0)))
        r = r.reshape(mpad // rep, lane_w)
        kernel = functools.partial(_bn_act_add_kernel, relu=relu)
        in_specs = [
            pl.BlockSpec((tmb, lane_w), lambda i: (i, 0)),
            pl.BlockSpec((tmb, lane_w), lambda i: (i, 0)),
            pl.BlockSpec((1, lane_w), lambda i: (0, 0)),
            pl.BlockSpec((1, lane_w), lambda i: (0, 0)),
        ]
        args = (y2, r, scale, bias)

    out = pl.pallas_call(
        kernel,
        grid=(mt,),
        in_specs=in_specs,
        out_specs=pl.BlockSpec((tmb, lane_w), lambda i: (i, 0)),
        out_shape=jax.ShapeDtypeStruct((mpad // rep, lane_w), ACT_DTYPE),
        compiler_params=pltpu.CompilerParams(
            dimension_semantics=("parallel",),
            vmem_limit_bytes=_VMEM_LIMIT),
    )(*args)
    out = out.reshape(mpad, cout)[:m]
    return out.reshape(n, ho, wo, cout)


def _tap_max(stacked):
    """Elementwise max over the leading (tap) axis of a (T, M, C) stack,
    tiled over M and lane-packed so stores are full-lane."""
    taps, m, c = stacked.shape
    rep = max(1, _LANE_TARGET // c)
    m2 = -(-m // rep)
    tmb, m2pad = _choose_m_tile(m2, 1024)
    mpad = m2pad * rep
    if mpad != m:
        stacked = jnp.pad(stacked, ((0, 0), (0, mpad - m), (0, 0)))
    lane_w = c * rep
    stacked = stacked.reshape(taps, m2pad, lane_w)
    mt = m2pad // tmb

    out = pl.pallas_call(
        _tap_max_kernel,
        grid=(mt,),
        in_specs=[pl.BlockSpec((taps, tmb, lane_w), lambda i: (0, i, 0))],
        out_specs=pl.BlockSpec((tmb, lane_w), lambda i: (i, 0)),
        out_shape=jax.ShapeDtypeStruct((m2pad, lane_w), stacked.dtype),
        compiler_params=pltpu.CompilerParams(
            dimension_semantics=("parallel",),
            vmem_limit_bytes=_VMEM_LIMIT),
    )(stacked)
    return out.reshape(mpad, c)[:m]


def maxpool_3x3_s2_p1(x):
    """Separable 3x3/s2/p1 max pool: vertical 3-max then horizontal 3-max
    (6x tap bytes instead of 9x)."""
    n, h, w, c = x.shape
    ho = (h - 1) // 2 + 1
    wo = (w - 1) // 2 + 1
    # vertical pass (stride 2 along H)
    xp = jnp.pad(x, ((0, 0), (1, 1), (0, 0), (0, 0)), constant_values=-jnp.inf)
    taps = jnp.stack([xp[:, i:i + 2 * ho:2, :, :] for i in range(3)], axis=0)
    v = _tap_max(taps.reshape(3, n * ho * w, c)).reshape(n, ho, w, c)
    # horizontal pass (stride 2 along W)
    vp = jnp.pad(v, ((0, 0), (0, 0), (1, 1), (0, 0)), constant_values=-jnp.inf)
    taps = jnp.stack([vp[:, :, j:j + 2 * wo:2, :] for j in range(3)], axis=0)
    o = _tap_max(taps.reshape(3, n * ho * wo, c))
    return o.reshape(n, ho, wo, c)


def avgpool_fc(x, fc_w, fc_b):
    n, h, w, c = x.shape
    xr = x.reshape(n, h * w, c)
    w2 = fc_w.astype(jnp.float32)
    b2 = fc_b.reshape(1, -1).astype(jnp.float32)
    nc = fc_w.shape[1]
    return pl.pallas_call(
        _head_kernel,
        grid=(1,),
        in_specs=[_full_spec(xr), _full_spec(w2), _full_spec(b2)],
        out_specs=pl.BlockSpec((n, nc), lambda i: (0, 0)),
        out_shape=jax.ShapeDtypeStruct((n, nc), jnp.float32),
        compiler_params=pltpu.CompilerParams(
            dimension_semantics=("arbitrary",),
            vmem_limit_bytes=_VMEM_LIMIT),
    )(xr, w2, b2)


# ---------------------------------------------------------------------------
# Model
# ---------------------------------------------------------------------------
def basic_block(x, p):
    stride = p["stride"]
    # quant() calls are identity (see TODO at top of file).
    if "ds_w" in p:
        residual = conv_bn(x, p["ds_w"], p["ds_g"], p["ds_b"],
                           stride=stride, pad=0, relu=False)
    else:
        residual = x
    h = conv_bn(x, p["w1"], p["g1"], p["b1"], stride=stride, pad=1, relu=True)
    out = conv_bn(h, p["w2"], p["g2"], p["b2"], stride=1, pad=1, relu=True,
                  residual=residual)
    return out


def lp_resnet_forward(x_nchw, params):
    # high_quant(x): identity
    x = jnp.transpose(x_nchw, (0, 2, 3, 1)).astype(ACT_DTYPE)   # NCHW -> NHWC
    x = conv_bn(x, params["conv1_w"], params["bn1_g"], params["bn1_b"],
                stride=2, pad=3, relu=True)
    x = maxpool_3x3_s2_p1(x)
    # low_quant(x): identity
    for layer in params["layers"]:
        for blk in layer:
            x = basic_block(x, blk)
    out = avgpool_fc(x, params["fc_w"], params["fc_b"])
    # high_quant(out): identity
    return out


# ---------------------------------------------------------------------------
# Deterministic parameter init (matches PyTorch __init__ shapes / init rules)
# ---------------------------------------------------------------------------
def _conv_init(key, kh, kw, cin, cout):
    n = kh * kw * cout
    return jax.random.normal(key, (kh, kw, cin, cout), jnp.float32) * math.sqrt(2.0 / n)


def init_params(key, num_blocks=(1, 1, 1, 1), num_classes=10):
    keys = iter(jax.random.split(key, 64))
    params = {
        "conv1_w": _conv_init(next(keys), 7, 7, 3, 64),
        "bn1_g": jnp.ones((64,), jnp.float32),
        "bn1_b": jnp.zeros((64,), jnp.float32),
    }
    inplanes = 64
    layers = []
    for planes, stride, nb in zip((64, 128, 256, 512), (1, 2, 2, 2), num_blocks):
        blocks = []
        for bi in range(nb):
            s = stride if bi == 0 else 1
            blk = {
                "stride": s,
                "w1": _conv_init(next(keys), 3, 3, inplanes, planes),
                "g1": jnp.ones((planes,), jnp.float32),
                "b1": jnp.zeros((planes,), jnp.float32),
                "w2": _conv_init(next(keys), 3, 3, planes, planes),
                "g2": jnp.ones((planes,), jnp.float32),
                "b2": jnp.zeros((planes,), jnp.float32),
            }
            if s != 1 or inplanes != planes:
                blk["ds_w"] = _conv_init(next(keys), 1, 1, inplanes, planes)
                blk["ds_g"] = jnp.ones((planes,), jnp.float32)
                blk["ds_b"] = jnp.zeros((planes,), jnp.float32)
            blocks.append(blk)
            inplanes = planes
        layers.append(blocks)
    params["layers"] = layers
    fan_in = 512
    bound = 1.0 / math.sqrt(fan_in)
    params["fc_w"] = jax.random.uniform(next(keys), (fan_in, num_classes),
                                        jnp.float32, -bound, bound)
    params["fc_b"] = jax.random.uniform(next(keys), (num_classes,),
                                        jnp.float32, -bound, bound)
    return params


if __name__ == "__main__":
    key = jax.random.PRNGKey(0)
    pkey, xkey = jax.random.split(key)
    params = init_params(pkey, num_blocks=(1, 1, 1, 1), num_classes=10)
    x = jax.random.normal(xkey, (2, 3, 32, 32), jnp.float32)   # NCHW like PyTorch

    out = lp_resnet_forward(x, params)
    out = jax.block_until_ready(out)
    assert out.shape == (2, 10), out.shape
    assert jnp.all(jnp.isfinite(out))
    print("KERNEL_OK")
</pallas_src>

<mosaic_0001>
module attributes {stable_mosaic.version = 11 : i64} {
  func.func @_conv_stats_kernel(%arg0: i32, %arg1: memref<256x256xbf16, #tpu.memory_space<vmem>>, %arg2: memref<256x64xbf16, #tpu.memory_space<vmem>>, %arg3: memref<256x64xbf16, #tpu.memory_space<vmem>>, %arg4: memref<1x8x64xf32, #tpu.memory_space<vmem>>) attributes {dimension_semantics = [#tpu.dimension_semantics<parallel>], iteration_bounds = array<i64: 2>, scalar_prefetch = 0 : i64, scratch_operands = 0 : i64, tpu.core_type = #tpu.core_type<tc>, window_params = [{transform_indices = @transform_0, window_bounds = array<i64: 256, 256>}, {pipeline_mode = #tpu.pipeline_mode<synchronous>, transform_indices = @transform_1, window_bounds = array<i64: 256, 64>}, {transform_indices = @transform_2, window_bounds = array<i64: 256, 64>}, {transform_indices = @transform_3, window_bounds = array<i64: 1, 8, 64>}]} {
    %c0 = arith.constant 0 : index
    %c0_0 = arith.constant 0 : index
    %0 = vector.load %arg1[%c0, %c0_0] : memref<256x256xbf16, #tpu.memory_space<vmem>>, vector<256x256xbf16>
    %c0_1 = arith.constant 0 : index
    %c0_2 = arith.constant 0 : index
    %1 = vector.load %arg2[%c0_1, %c0_2] : memref<256x64xbf16, #tpu.memory_space<vmem>>, vector<256x64xbf16>
    %cst = arith.constant dense<0.000000e+00> : vector<256x64xf32>
    %2 = tpu.matmul %0, %1, %cst {dimension_numbers = #tpu.dot_dimension_numbers<[1], [0], [0], [1], [0, 0, 1, 1], [], []>} : vector<256x256xbf16>, vector<256x64xbf16>, vector<256x64xf32> -> vector<256x64xf32>
    %3 = arith.truncf %2 : vector<256x64xf32> to vector<256x64xbf16>
    %c0_3 = arith.constant 0 : index
    %c0_4 = arith.constant 0 : index
    %4 = vector.load %arg3[%c0_3, %c0_4] : memref<256x64xbf16, #tpu.memory_space<vmem>>, vector<256x64xbf16>
    tpu.vector_store %arg3[%c0_3, %c0_4], %3 {strides = array<i32>} : memref<256x64xbf16, #tpu.memory_space<vmem>>, vector<256x64xbf16>,
    %cst_5 = arith.constant dense<0.000000e+00> : vector<64xf32>
    %5 = vector.multi_reduction <add>, %2, %cst_5 [0] : vector<256x64xf32> to vector<64xf32>
    %6 = vector.shape_cast %5 : vector<64xf32> to vector<1x64xf32>
    %7 = arith.mulf %2, %2 : vector<256x64xf32>
    %cst_6 = arith.constant dense<0.000000e+00> : vector<64xf32>
    %8 = vector.multi_reduction <add>, %7, %cst_6 [0] : vector<256x64xf32> to vector<64xf32>
    %9 = vector.shape_cast %8 : vector<64xf32> to vector<1x64xf32>
    %10 = tpu.iota {dimensions = array<i32: 0>} : vector<8x64xi32>
    %c0_i32 = arith.constant 0 : i32
    %11 = vector.broadcast %c0_i32 : i32 to vector<8x64xi32>
    %12 = arith.cmpi eq, %10, %11 : vector<8x64xi32>
    %c1_i32 = arith.constant 1 : i32
    %13 = vector.broadcast %c1_i32 : i32 to vector<8x64xi32>
    %14 = arith.cmpi eq, %10, %13 : vector<8x64xi32>
    %cst_7 = arith.constant 0.000000e+00 : f32
    %15 = vector.shape_cast %9 : vector<1x64xf32> to vector<1x64xf32>
    %16 = vector.broadcast %15 : vector<1x64xf32> to vector<8x64xf32>
    %17 = vector.broadcast %cst_7 : f32 to vector<8x64xf32>
    %18 = arith.select %14, %16, %17 : vector<8x64xi1>, vector<8x64xf32>
    %19 = vector.shape_cast %6 : vector<1x64xf32> to vector<1x64xf32>
    %20 = vector.broadcast %19 : vector<1x64xf32> to vector<8x64xf32>
    %21 = arith.select %12, %20, %18 : vector<8x64xi1>, vector<8x64xf32>
    %22 = vector.shape_cast %21 : vector<8x64xf32> to vector<1x8x64xf32>
    %c0_8 = arith.constant 0 : index
    %c0_9 = arith.constant 0 : index
    %c0_10 = arith.constant 0 : index
    %23 = vector.load %arg4[%c0_8, %c0_9, %c0_10] : memref<1x8x64xf32, #tpu.memory_space<vmem>>, vector<1x8x64xf32>
    tpu.vector_store %arg4[%c0_8, %c0_9, %c0_10], %22 {strides = array<i32>} : memref<1x8x64xf32, #tpu.memory_space<vmem>>, vector<1x8x64xf32>,
    return
  }
  func.func @transform_0(%arg0: i32) -> (i32, i32) {
    %c0_i32 = arith.constant 0 : i32
    %c0_i32_0 = arith.constant 0 : i32
    return %arg0, %c0_i32 : i32, i32
  }
  func.func @transform_1(%arg0: i32) -> (i32, i32) {
    %c0_i32 = arith.constant 0 : i32
    %c0_i32_0 = arith.constant 0 : i32
    %c0_i32_1 = arith.constant 0 : i32
    return %c0_i32, %c0_i32_0 : i32, i32
  }
  func.func @transform_2(%arg0: i32) -> (i32, i32) {
    %c0_i32 = arith.constant 0 : i32
    %c0_i32_0 = arith.constant 0 : i32
    return %arg0, %c0_i32 : i32, i32
  }
  func.func @transform_3(%arg0: i32) -> (i32, i32, i32) {
    %c0_i32 = arith.constant 0 : i32
    %c0_i32_0 = arith.constant 0 : i32
    %c0_i32_1 = arith.constant 0 : i32
    return %arg0, %c0_i32, %c0_i32_0 : i32, i32, i32
  }
}

</mosaic_0001>

<llo_original>
// kernel: tpu_custom_call.1
$region0: #{tpu_custom_call.1}
  #allocation0 [shape = 'u32[]', space=smem, size = 0x4, offset = 0x4, fixed_abs, tag = 'smem constant byte address 0x4 - core index']
  #allocation1 [shape = 'u32[144,128]{1,0:T(1,128)}', space=vmem, size = 0x12000, scoped, tag = 'internal scratch']
  %s0 = inlined_call_operand.hbm [shape: bf16[512,256], index: 0, kind: input, shape index: {}]
  %s1 = inlined_call_operand.vmem [shape: bf16[256,64], index: 1, kind: input, shape index: {}]
  %s2 = inlined_call_operand.vmem [shape: bf16[512,64], index: 2, kind: output, shape index: {0}]
  %s3 = inlined_call_operand.hbm [shape: f32[2,8,64], index: 3, kind: output, shape index: {1}]
  %4 = xla_tuple %s2, %s3
  %s5 = sld [smem:[#allocation0]]
  $region53: #{tpu_custom_call.1} parent=0
    _
  %s7 = ssub.s32 1, %s5
  %s8 = scalar_select 0, %s7, %s5
  $region1: #{tpu_custom_call.1} parent=0
    #allocation2 [shape = 'u8[262144]{0}', space=vmem, size = 0x40000, scoped, tag = 'input window, operand 0']
    #allocation3 [shape = 's32[2]{0}', space=sflag, size = 0x8, scoped, tag = 'scoped memory for tpu_custom_call.1']
    #allocation4 [shape = 's32[2]{0}', space=sflag, size = 0x8, scoped, tag = 'scoped memory for tpu_custom_call.1']
    #allocation5 [shape = 'u8[8192]{0}', space=vmem, size = 0x2000, scoped, tag = 'output window, operand 1']
    %9 = vsyncpa [#allocation3], 0
    %s10 = scalar_lea.sflag [#allocation3], 1
    %11 = vsyncpa %s10, 0
    %12 = vsyncpa [#allocation4], 0
    %s13 = scalar_lea.sflag [#allocation4], 1
    %14 = vsyncpa %s13, 0
    loop: start=0, step=1, limit=4
    $region2: #{tpu_custom_call.1} parent=1 // loop_pre_header
      _
    $region3: #{tpu_custom_call.1} parent=1 // loop_header
      %s16 = sphi 0, %s20
      %p17 = scmp.ge.s32.totalorder %s16, 4
      %s26 = sphi 0, %s28
      %s29 = sphi 0, %s26
      %s30 = sphi 0, %s29
      %s46 = sphi 0, %s30
      %s50 = sphi 0, %s50
      %s52 = sphi 0, %s50
      %s53 = sphi 0, %s52
      %s67 = sphi 0, %s53
      %s73 = sphi 0, %s75
      %s76 = sphi 0, %s73
      %s77 = sphi 0, %s76
      %s93 = sphi 0, %s77
      %s99 = sphi 0, %s101
      %s102 = sphi 0, %s99
      %s103 = sphi 0, %s102
      %s119 = sphi 0, %s103
    $region4: #{tpu_custom_call.1} parent=1 // loop_header_branch
      %19 = sbr.rel (%p17) target = $region8
    $region5: #{tpu_custom_call.1} parent=1 // loop_body
      %s21 = ssub.s32 %s16, 1
      %s22 = ssub.s32 %s16, 2
      %s23 = sadd.s32 %s16, 1
      %s24 = ssub.s32 %s16, %s23
      %p25 = scmp.eq.s32.totalorder %s24, 0
      %s27 = sadd.s32 %s26, 1
      %s28 = scalar_select %p25, %s26, %s27
      %p31 = pneg %p25
      %p32 = scmp.eq.s32.totalorder %s16, 1
      %p33 = por %p31, %p32
      %p34 = scmp.ne.s32.totalorder %s26, %s29
      %p35 = scmp.eq.s32.totalorder %s16, 0
      %p36 = por %p34, %p35
      %p37 = scmp.ne.s32.totalorder %s26, %s29
      %p38 = scmp.eq.s32.totalorder %s21, 1
      %p39 = por %p37, %p38
      %p40 = scmp.ne.s32.totalorder %s29, %s30
      %p41 = scmp.eq.s32.totalorder %s21, 0
      %p42 = por %p40, %p41
      %p43 = scmp.ne.s32.totalorder %s29, %s30
      %p44 = scmp.eq.s32.totalorder %s22, 1
      %p45 = por %p43, %p44
      %p47 = scmp.ne.s32.totalorder %s30, %s46
      %p48 = scmp.eq.s32.totalorder %s22, 0
      %p49 = por %p47, %p48
      %s51 = sadd.s32 %s50, 1
      %p54 = scmp.eq.s32.totalorder %s16, 1
      %p55 = scmp.ne.s32.totalorder %s50, %s52
      %p56 = scmp.eq.s32.totalorder %s16, 0
      %p57 = por %p55, %p56
      %p58 = scmp.ne.s32.totalorder %s50, %s52
      %p59 = scmp.eq.s32.totalorder %s21, 1
      %p60 = por %p58, %p59
      %p61 = scmp.ne.s32.totalorder %s52, %s53
      %p62 = scmp.eq.s32.totalorder %s21, 0
      %p63 = por %p61, %p62
      %p64 = scmp.ne.s32.totalorder %s52, %s53
      %p65 = scmp.eq.s32.totalorder %s22, 1
      %p66 = por %p64, %p65
      %p68 = scmp.ne.s32.totalorder %s53, %s67
      %p69 = scmp.eq.s32.totalorder %s22, 0
      %p70 = por %p68, %p69
      %s71 = ssub.s32 %s16, %s23
      %p72 = scmp.eq.s32.totalorder %s71, 0
      %s74 = sadd.s32 %s73, 1
      %s75 = scalar_select %p72, %s73, %s74
      %p78 = pneg %p72
      %p79 = scmp.eq.s32.totalorder %s16, 1
      %p80 = por %p78, %p79
      %p81 = scmp.ne.s32.totalorder %s73, %s76
      %p82 = scmp.eq.s32.totalorder %s16, 0
      %p83 = por %p81, %p82
      %p84 = scmp.ne.s32.totalorder %s73, %s76
      %p85 = scmp.eq.s32.totalorder %s21, 1
      %p86 = por %p84, %p85
      %p87 = scmp.ne.s32.totalorder %s76, %s77
      %p88 = scmp.eq.s32.totalorder %s21, 0
      %p89 = por %p87, %p88
      %p90 = scmp.ne.s32.totalorder %s76, %s77
      %p91 = scmp.eq.s32.totalorder %s22, 1
      %p92 = por %p90, %p91
      %p94 = scmp.ne.s32.totalorder %s77, %s93
      %p95 = scmp.eq.s32.totalorder %s22, 0
      %p96 = por %p94, %p95
      %s97 = ssub.s32 %s16, %s23
      %p98 = scmp.eq.s32.totalorder %s97, 0
      %s100 = sadd.s32 %s99, 1
      %s101 = scalar_select %p98, %s99, %s100
      %p104 = pneg %p98
      %p105 = scmp.eq.s32.totalorder %s16, 1
      %p106 = por %p104, %p105
      %p107 = scmp.ne.s32.totalorder %s99, %s102
      %p108 = scmp.eq.s32.totalorder %s16, 0
      %p109 = por %p107, %p108
      %p110 = scmp.ne.s32.totalorder %s99, %s102
      %p111 = scmp.eq.s32.totalorder %s21, 1
      %p112 = por %p110, %p111
      %p113 = scmp.ne.s32.totalorder %s102, %s103
      %p114 = scmp.eq.s32.totalorder %s21, 0
      %p115 = por %p113, %p114
      %p116 = scmp.ne.s32.totalorder %s102, %s103
      %p117 = scmp.eq.s32.totalorder %s22, 1
      %p118 = por %p116, %p117
      %p120 = scmp.ne.s32.totalorder %s103, %s119
      %p121 = scmp.eq.s32.totalorder %s22, 0
      %p122 = por %p120, %p121
      %p123 = scmp.le.s32.totalorder 1, %s16
      %p124 = scmp.lt.s32.totalorder %s16, 3
      %p125 = pnand %p123, %p124
      %p126 = pneg %p125
      // Predicated region
      $region9: #{tpu_custom_call.1} parent=5 // pred_check
        _
      $region10: #{tpu_custom_call.1} parent=5 // pred_check_branch
        %128 = sbr.rel (%p125) target = $region12
      $region11: #{tpu_custom_call.1} parent=5 // pred_region
        %s129 = ssub.s32 %s16, 1
        // Predicated region
        $region13: #{tpu_custom_call.1} parent=11 // pred_check
          %p130 = pneg %p63
        $region14: #{tpu_custom_call.1} parent=11 // pred_check_branch
          %132 = sbr.rel (%p130) target = $region16
        $region15: #{tpu_custom_call.1} parent=11 // pred_region
          _
        $region16: #{tpu_custom_call.1} parent=11 // pred_fallthru
          _
      $region12: #{tpu_custom_call.1} parent=5 // pred_fallthru
        _
      %p133 = scmp.lt.s32.totalorder %s16, 2
      // Predicated region
      $region17: #{tpu_custom_call.1} parent=5 // pred_check
        %p134 = pneg %p133
      $region18: #{tpu_custom_call.1} parent=5 // pred_check_branch
        %136 = sbr.rel (%p134) target = $region20
      $region19: #{tpu_custom_call.1} parent=5 // pred_region
        // Predicated region
        $region21: #{tpu_custom_call.1} parent=19 // pred_check
          %p137 = pneg %p36
        $region22: #{tpu_custom_call.1} parent=19 // pred_check_branch
          %139 = sbr.rel (%p137) target = $region24
        $region23: #{tpu_custom_call.1} parent=19 // pred_region
          %s140 = sand.u32 %s26, 1
          %s141 = scalar_lea.sflag [#allocation3], %s140
          %s142 = sand.u32 %s26, 1
          %s143 = smul.addr %s142, 256
          %s144 = scalar_lea.vmem [#allocation2], %s143
          %s145 = smul.u32 32, %s16
          %s147 = ssub.s32 4096, 4096
          %148 = vsyncadd %s141, %s147
          %s149 = smul.addr %s145, 2
          %s150 = smul.addr %s149, 64
          %s151 = scalar_lea.hbm %s0, %s150
          %s152 = sshll.u32 %s144, 4
          %s153 = int_to_ptr.vmem [resolvable:$true] %s152
          %158 = dma.hbm_to_vmem [thread:$0]  %s151, 4096, %s153, %s141, 128, 128, 8
        $region24: #{tpu_custom_call.1} parent=19 // pred_fallthru
          _
      $region20: #{tpu_custom_call.1} parent=5 // pred_fallthru
        _
      %p159 = scmp.le.s32.totalorder 1, %s16
      %p160 = scmp.lt.s32.totalorder %s16, 3
      %p161 = pnand %p159, %p160
      %p162 = pneg %p161
      // Predicated region
      $region25: #{tpu_custom_call.1} parent=5 // pred_check
        _
      $region26: #{tpu_custom_call.1} parent=5 // pred_check_branch
        %164 = sbr.rel (%p161) target = $region28
      $region27: #{tpu_custom_call.1} parent=5 // pred_region
        %s165 = ssub.s32 %s16, 1
        %s166 = sand.u32 %s29, 1
        %s167 = scalar_lea.sflag [#allocation3], %s166
        %s168 = sand.u32 %s29, 1
        %s169 = smul.addr %s168, 256
        %s170 = scalar_lea.vmem [#allocation2], %s169
        // Predicated region
        $region29: #{tpu_custom_call.1} parent=27 // pred_check
          %p171 = pneg %p42
        $region30: #{tpu_custom_call.1} parent=27 // pred_check_branch
          %173 = sbr.rel (%p171) target = $region32
        $region31: #{tpu_custom_call.1} parent=27 // pred_region
          %174 = dma.done %s167, 4096
        $region32: #{tpu_custom_call.1} parent=27 // pred_fallthru
          _
        %s175 = sand.u32 %s29, 1
        %s176 = scalar_lea.sflag [#allocation3], %s175
        %s177 = sand.u32 %s29, 1
        %s178 = smul.addr %s177, 256
        %s179 = scalar_lea.vmem [#allocation2], %s178
        %p180 = pneg %p42
        %p181 = pneg %p39
        %p182 = pneg %p63
        %p183 = pneg %p60
        %p184 = pneg %p89
        %p185 = pneg %p86
        %s186 = smul.u32 32, %s21
        %p187 = scmp.lt.s32.totalorder %s186, 63
        %s188 = scalar_select %p187, %s186, 63
        %s189 = smul.addr %s188, 4
        %s190 = scalar_lea.vmem %s2, %s189
        %p191 = pneg %p115
        %p192 = pneg %p112
        %s193 = sand.u32 %s102, 1
        %s194 = scalar_lea.sflag [#allocation4], %s193
        %s195 = sand.u32 %s102, 1
        %s196 = smul.addr %s195, 8
        %s197 = scalar_lea.vmem [#allocation5], %s196
        %s198 = smul.u32 32, %s21
        %s199 = smul.u32 32, %s21
        %p200 = scmp.lt.s32.totalorder %s199, 63
        %s201 = scalar_select %p200, %s199, 63
        %s202 = smul.addr %s201, 4
        %s203 = scalar_lea.vmem %s2, %s202
        %s204 = smul.u32 32, %s21
        %v206 = vld [vmem:[%s170] sm:$0xff]
        %v207 = vld [vmem:[%s170 + $0x8] sm:$0xff]
        %v208 = vld [vmem:[%s170 + $0x10] sm:$0xff]
        %v209 = vld [vmem:[%s170 + $0x18] sm:$0xff]
        %v210 = vld [vmem:[%s170 + $0x20] sm:$0xff]
        %v211 = vld [vmem:[%s170 + $0x28] sm:$0xff]
        %v212 = vld [vmem:[%s170 + $0x30] sm:$0xff]
        %v213 = vld [vmem:[%s170 + $0x38] sm:$0xff]
        %v214 = vld [vmem:[%s170 + $0x40] sm:$0xff]
        %v215 = vld [vmem:[%s170 + $0x48] sm:$0xff]
        %v216 = vld [vmem:[%s170 + $0x50] sm:$0xff]
        %v217 = vld [vmem:[%s170 + $0x58] sm:$0xff]
        %v218 = vld [vmem:[%s170 + $0x60] sm:$0xff]
        %v219 = vld [vmem:[%s170 + $0x68] sm:$0xff]
        %v220 = vld [vmem:[%s170 + $0x70] sm:$0xff]
        %v221 = vld [vmem:[%s170 + $0x78] sm:$0xff]
        %v222 = vld [vmem:[%s170 + $0x80] sm:$0xff]
        %v223 = vld [vmem:[%s170 + $0x88] sm:$0xff]
        %v224 = vld [vmem:[%s170 + $0x90] sm:$0xff]
        %v225 = vld [vmem:[%s170 + $0x98] sm:$0xff]
        %v226 = vld [vmem:[%s170 + $0xa0] sm:$0xff]
        %v227 = vld [vmem:[%s170 + $0xa8] sm:$0xff]
        %v228 = vld [vmem:[%s170 + $0xb0] sm:$0xff]
        %v229 = vld [vmem:[%s170 + $0xb8] sm:$0xff]
        %v230 = vld [vmem:[%s170 + $0xc0] sm:$0xff]
        %v231 = vld [vmem:[%s170 + $0xc8] sm:$0xff]
        %v232 = vld [vmem:[%s170 + $0xd0] sm:$0xff]
        %v233 = vld [vmem:[%s170 + $0xd8] sm:$0xff]
        %v234 = vld [vmem:[%s170 + $0xe0] sm:$0xff]
        %v235 = vld [vmem:[%s170 + $0xe8] sm:$0xff]
        %v236 = vld [vmem:[%s170 + $0xf0] sm:$0xff]
        %v237 = vld [vmem:[%s170 + $0xf8] sm:$0xff]
        %v238 = vld [vmem:[%s1] sm:$0xf]
        %v239 = vld [vmem:[%s1 + $0x4] sm:$0xf]
        %v240 = vld [vmem:[%s1 + $0x8] sm:$0xf]
        %v241 = vld [vmem:[%s1 + $0xc] sm:$0xf]
        %v242 = vld [vmem:[%s1 + $0x10] sm:$0xf]
        %v243 = vld [vmem:[%s1 + $0x14] sm:$0xf]
        %v244 = vld [vmem:[%s1 + $0x18] sm:$0xf]
        %v245 = vld [vmem:[%s1 + $0x1c] sm:$0xf]
        %v246 = vld [vmem:[%s1 + $0x20] sm:$0xf]
        %v247 = vld [vmem:[%s1 + $0x24] sm:$0xf]
        %v248 = vld [vmem:[%s1 + $0x28] sm:$0xf]
        %v249 = vld [vmem:[%s1 + $0x2c] sm:$0xf]
        %v250 = vld [vmem:[%s1 + $0x30] sm:$0xf]
        %v251 = vld [vmem:[%s1 + $0x34] sm:$0xf]
        %v252 = vld [vmem:[%s1 + $0x38] sm:$0xf]
        %v253 = vld [vmem:[%s1 + $0x3c] sm:$0xf]
        %v254 = vld [vmem:[%s1 + $0x40] sm:$0xf]
        %v255 = vld [vmem:[%s1 + $0x44] sm:$0xf]
        %v256 = vld [vmem:[%s1 + $0x48] sm:$0xf]
        %v257 = vld [vmem:[%s1 + $0x4c] sm:$0xf]
        %v258 = vld [vmem:[%s1 + $0x50] sm:$0xf]
        %v259 = vld [vmem:[%s1 + $0x54] sm:$0xf]
        %v260 = vld [vmem:[%s1 + $0x58] sm:$0xf]
        %v261 = vld [vmem:[%s1 + $0x5c] sm:$0xf]
        %v262 = vld [vmem:[%s1 + $0x60] sm:$0xf]
        %v263 = vld [vmem:[%s1 + $0x64] sm:$0xf]
        %v264 = vld [vmem:[%s1 + $0x68] sm:$0xf]
        %v265 = vld [vmem:[%s1 + $0x6c] sm:$0xf]
        %v266 = vld [vmem:[%s1 + $0x70] sm:$0xf]
        %v267 = vld [vmem:[%s1 + $0x74] sm:$0xf]
        %v268 = vld [vmem:[%s1 + $0x78] sm:$0xf]
        %v269 = vld [vmem:[%s1 + $0x7c] sm:$0xf]
        %v302 = vunpack.c.l.b16 %v206
        %v303 = vunpack.c.h.b16 %v206
        %v304 = vunpack.c.l.b16 %v207
        %v305 = vunpack.c.h.b16 %v207
        %v306 = vunpack.c.l.b16 %v208
        %v307 = vunpack.c.h.b16 %v208
        %v308 = vunpack.c.l.b16 %v209
        %v309 = vunpack.c.h.b16 %v209
        %v310 = vunpack.c.l.b16 %v210
        %v311 = vunpack.c.h.b16 %v210
        %v312 = vunpack.c.l.b16 %v211
        %v313 = vunpack.c.h.b16 %v211
        %v314 = vunpack.c.l.b16 %v212
        %v315 = vunpack.c.h.b16 %v212
        %v316 = vunpack.c.l.b16 %v213
        %v317 = vunpack.c.h.b16 %v213
        %v318 = vunpack.c.l.b16 %v214
        %v319 = vunpack.c.h.b16 %v214
        %v320 = vunpack.c.l.b16 %v215
        %v321 = vunpack.c.h.b16 %v215
        %v322 = vunpack.c.l.b16 %v216
        %v323 = vunpack.c.h.b16 %v216
        %v324 = vunpack.c.l.b16 %v217
        %v325 = vunpack.c.h.b16 %v217
        %v326 = vunpack.c.l.b16 %v218
        %v327 = vunpack.c.h.b16 %v218
        %v328 = vunpack.c.l.b16 %v219
        %v329 = vunpack.c.h.b16 %v219
        %v330 = vunpack.c.l.b16 %v220
        %v331 = vunpack.c.h.b16 %v220
        %v332 = vunpack.c.l.b16 %v221
        %v333 = vunpack.c.h.b16 %v221
        %v334 = vunpack.c.l.b16 %v222
        %v335 = vunpack.c.h.b16 %v222
        %v336 = vunpack.c.l.b16 %v223
        %v337 = vunpack.c.h.b16 %v223
        %v338 = vunpack.c.l.b16 %v224
        %v339 = vunpack.c.h.b16 %v224
        %v340 = vunpack.c.l.b16 %v225
        %v341 = vunpack.c.h.b16 %v225
        %v342 = vunpack.c.l.b16 %v226
        %v343 = vunpack.c.h.b16 %v226
        %v344 = vunpack.c.l.b16 %v227
        %v345 = vunpack.c.h.b16 %v227
        %v346 = vunpack.c.l.b16 %v228
        %v347 = vunpack.c.h.b16 %v228
        %v348 = vunpack.c.l.b16 %v229
        %v349 = vunpack.c.h.b16 %v229
        %v350 = vunpack.c.l.b16 %v230
        %v351 = vunpack.c.h.b16 %v230
        %v352 = vunpack.c.l.b16 %v231
        %v353 = vunpack.c.h.b16 %v231
        %v354 = vunpack.c.l.b16 %v232
        %v355 = vunpack.c.h.b16 %v232
        %v356 = vunpack.c.l.b16 %v233
        %v357 = vunpack.c.h.b16 %v233
        %v358 = vunpack.c.l.b16 %v234
        %v359 = vunpack.c.h.b16 %v234
        %v360 = vunpack.c.l.b16 %v235
        %v361 = vunpack.c.h.b16 %v235
        %v362 = vunpack.c.l.b16 %v236
        %v363 = vunpack.c.h.b16 %v236
        %v364 = vunpack.c.l.b16 %v237
        %v365 = vunpack.c.h.b16 %v237
        %v366 = vpack.c.b16 %v304, %v302
        %v367 = vpack.c.b16 %v305, %v303
        %v368 = vpack.c.b16 %v308, %v306
        %v369 = vpack.c.b16 %v309, %v307
        %v370 = vpack.c.b16 %v312, %v310
        %v371 = vpack.c.b16 %v313, %v311
        %v372 = vpack.c.b16 %v316, %v314
        %v373 = vpack.c.b16 %v317, %v315
        %v374 = vpack.c.b16 %v320, %v318
        %v375 = vpack.c.b16 %v321, %v319
        %v376 = vpack.c.b16 %v324, %v322
        %v377 = vpack.c.b16 %v325, %v323
        %v378 = vpack.c.b16 %v328, %v326
        %v379 = vpack.c.b16 %v329, %v327
        %v380 = vpack.c.b16 %v332, %v330
        %v381 = vpack.c.b16 %v333, %v331
        %v382 = vpack.c.b16 %v336, %v334
        %v383 = vpack.c.b16 %v337, %v335
        %v384 = vpack.c.b16 %v340, %v338
        %v385 = vpack.c.b16 %v341, %v339
        %v386 = vpack.c.b16 %v344, %v342
        %v387 = vpack.c.b16 %v345, %v343
        %v388 = vpack.c.b16 %v348, %v346
        %v389 = vpack.c.b16 %v349, %v347
        %v390 = vpack.c.b16 %v352, %v350
        %v391 = vpack.c.b16 %v353, %v351
        %v392 = vpack.c.b16 %v356, %v354
        %v393 = vpack.c.b16 %v357, %v355
        %v394 = vpack.c.b16 %v360, %v358
        %v395 = vpack.c.b16 %v361, %v359
        %v396 = vpack.c.b16 %v364, %v362
        %v397 = vpack.c.b16 %v365, %v363
        %v462 = vunpack.c.l.b16 %v238
        %v463 = vunpack.c.l.b16 %v239
        %v464 = vunpack.c.l.b16 %v240
        %v465 = vunpack.c.l.b16 %v241
        %v466 = vunpack.c.l.b16 %v242
        %v467 = vunpack.c.l.b16 %v243
        %v468 = vunpack.c.l.b16 %v244
        %v469 = vunpack.c.l.b16 %v245
        %v470 = vunpack.c.l.b16 %v246
        %v471 = vunpack.c.l.b16 %v247
        %v472 = vunpack.c.l.b16 %v248
        %v473 = vunpack.c.l.b16 %v249
        %v474 = vunpack.c.l.b16 %v250
        %v475 = vunpack.c.l.b16 %v251
        %v476 = vunpack.c.l.b16 %v252
        %v477 = vunpack.c.l.b16 %v253
        %v478 = vunpack.c.l.b16 %v254
        %v479 = vunpack.c.l.b16 %v255
        %v480 = vunpack.c.l.b16 %v256
        %v481 = vunpack.c.l.b16 %v257
        %v482 = vunpack.c.l.b16 %v258
        %v483 = vunpack.c.l.b16 %v259
        %v484 = vunpack.c.l.b16 %v260
        %v485 = vunpack.c.l.b16 %v261
        %v486 = vunpack.c.l.b16 %v262
        %v487 = vunpack.c.l.b16 %v263
        %v488 = vunpack.c.l.b16 %v264
        %v489 = vunpack.c.l.b16 %v265
        %v490 = vunpack.c.l.b16 %v266
        %v491 = vunpack.c.l.b16 %v267
        %v492 = vunpack.c.l.b16 %v268
        %v493 = vunpack.c.l.b16 %v269
        %v494 = vpack.c.b16 %v463, %v462
        %v495 = vpack.c.b16 %v465, %v464
        %v496 = vpack.c.b16 %v467, %v466
        %v497 = vpack.c.b16 %v469, %v468
        %v498 = vpack.c.b16 %v471, %v470
        %v499 = vpack.c.b16 %v473, %v472
        %v500 = vpack.c.b16 %v475, %v474
        %v501 = vpack.c.b16 %v477, %v476
        %v502 = vpack.c.b16 %v479, %v478
        %v503 = vpack.c.b16 %v481, %v480
        %v504 = vpack.c.b16 %v483, %v482
        %v505 = vpack.c.b16 %v485, %v484
        %v506 = vpack.c.b16 %v487, %v486
        %v507 = vpack.c.b16 %v489, %v488
        %v508 = vpack.c.b16 %v491, %v490
        %v509 = vpack.c.b16 %v493, %v492
        %526 = vmatprep.subr.bf16.mxu0 0
        %527 = vmatpush1.bf16.msra.mxu0 %v501
        %528 = vmatprep.subr.bf16.mxu0 0
        %529 = vmatpush1.bf16.msra.mxu0 %v500
        %530 = vmatprep.subr.bf16.mxu0 0
        %531 = vmatpush1.bf16.msra.mxu0 %v499
        %532 = vmatprep.subr.bf16.mxu0 0
        %533 = vmatpush1.bf16.msra.mxu0 %v498
        %534 = vmatprep.subr.bf16.mxu0 0
        %535 = vmatpush1.bf16.msra.mxu0 %v497
        %536 = vmatprep.subr.bf16.mxu0 0
        %537 = vmatpush1.bf16.msra.mxu0 %v496
        %538 = vmatprep.subr.bf16.mxu0 0
        %539 = vmatpush1.bf16.msra.mxu0 %v495
        %540 = vmatprep.subr.bf16.mxu0 0
        %541 = vmatpush1.bf16.msra.mxu0 %v494
        %542 = vmatprep.subr.bf16.mxu0 0
        %543 = vmatpush2.bf16.msra.mxu0 %v509
        %544 = vmatprep.subr.bf16.mxu0 0
        %545 = vmatpush2.bf16.msra.mxu0 %v508
        %546 = vmatprep.subr.bf16.mxu0 0
        %547 = vmatpush2.bf16.msra.mxu0 %v507
        %548 = vmatprep.subr.bf16.mxu0 0
        %549 = vmatpush2.bf16.msra.mxu0 %v506
        %550 = vmatprep.subr.bf16.mxu0 0
        %551 = vmatpush2.bf16.msra.mxu0 %v505
        %552 = vmatprep.subr.bf16.mxu0 0
        %553 = vmatpush2.bf16.msra.mxu0 %v504
        %554 = vmatprep.subr.bf16.mxu0 0
        %555 = vmatpush2.bf16.msra.mxu0 %v503
        %556 = vmatprep.subr.bf16.mxu0 0
        %557 = vmatpush2.bf16.msra.mxu0 %v502
        %558 = vmatprep.mubr.bf16.mxu0 %v367
        %559 = vmatmul.mubr.bf16.gmra.mxu0 %v366
        %v560 = vpop.f32.mrf.mxu0
        %v561 = vadd.f32 0.0, %v560
        %v562 = vpop.f32.mrf.mxu0
        %v563 = vpop.f32.mrf.mxu0
        %v564 = vadd.f32 0.0, %v563
        %v565 = vpop.f32.mrf.mxu0
        %566 = vmatprep.mubr.bf16.mxu0 %v369
        %567 = vmatmul.mubr.bf16.gmra.mxu0 %v368
        %v568 = vpop.f32.mrf.mxu0
        %v569 = vadd.f32 0.0, %v568
        %v570 = vpop.f32.mrf.mxu0
        %v571 = vpop.f32.mrf.mxu0
        %v572 = vadd.f32 0.0, %v571
        %v573 = vpop.f32.mrf.mxu0
        %574 = vmatprep.mubr.bf16.mxu0 %v371
        %575 = vmatmul.mubr.bf16.gmra.mxu0 %v370
        %v576 = vpop.f32.mrf.mxu0
        %v577 = vadd.f32 0.0, %v576
        %v578 = vpop.f32.mrf.mxu0
        %v579 = vpop.f32.mrf.mxu0
        %v580 = vadd.f32 0.0, %v579
        %v581 = vpop.f32.mrf.mxu0
        %582 = vmatprep.mubr.bf16.mxu0 %v373
        %583 = vmatmul.mubr.bf16.gmra.mxu0 %v372
        %v584 = vpop.f32.mrf.mxu0
        %v585 = vadd.f32 0.0, %v584
        %v586 = vpop.f32.mrf.mxu0
        %v587 = vpop.f32.mrf.mxu0
        %v588 = vadd.f32 0.0, %v587
        %v589 = vpop.f32.mrf.mxu0
        %590 = vmatprep.mubr.bf16.mxu0 %v375
        %591 = vmatmul.mubr.bf16.gmra.mxu0 %v374
        %v592 = vpop.f32.mrf.mxu0
        %v593 = vadd.f32 0.0, %v592
        %v594 = vpop.f32.mrf.mxu0
        %v595 = vpop.f32.mrf.mxu0
        %v596 = vadd.f32 0.0, %v595
        %v597 = vpop.f32.mrf.mxu0
        %598 = vmatprep.mubr.bf16.mxu0 %v377
        %599 = vmatmul.mubr.bf16.gmra.mxu0 %v376
        %v600 = vpop.f32.mrf.mxu0
        %v601 = vadd.f32 0.0, %v600
        %v602 = vpop.f32.mrf.mxu0
        %v603 = vpop.f32.mrf.mxu0
        %v604 = vadd.f32 0.0, %v603
        %v605 = vpop.f32.mrf.mxu0
        %606 = vmatprep.mubr.bf16.mxu0 %v379
        %607 = vmatmul.mubr.bf16.gmra.mxu0 %v378
        %v608 = vpop.f32.mrf.mxu0
        %v609 = vadd.f32 0.0, %v608
        %v610 = vpop.f32.mrf.mxu0
        %v611 = vpop.f32.mrf.mxu0
        %v612 = vadd.f32 0.0, %v611
        %v613 = vpop.f32.mrf.mxu0
        %614 = vmatprep.mubr.bf16.mxu0 %v381
        %615 = vmatmul.mubr.bf16.gmra.mxu0 %v380
        %v616 = vpop.f32.mrf.mxu0
        %v617 = vadd.f32 0.0, %v616
        %v618 = vpop.f32.mrf.mxu0
        %v619 = vpop.f32.mrf.mxu0
        %v620 = vadd.f32 0.0, %v619
        %v621 = vpop.f32.mrf.mxu0
        %622 = vmatprep.mubr.bf16.mxu0 %v383
        %623 = vmatmul.mubr.bf16.gmra.mxu0 %v382
        %v624 = vpop.f32.mrf.mxu0
        %v625 = vadd.f32 0.0, %v624
        %v626 = vpop.f32.mrf.mxu0
        %v627 = vpop.f32.mrf.mxu0
        %v628 = vadd.f32 0.0, %v627
        %v629 = vpop.f32.mrf.mxu0
        %630 = vmatprep.mubr.bf16.mxu0 %v385
        %631 = vmatmul.mubr.bf16.gmra.mxu0 %v384
        %v632 = vpop.f32.mrf.mxu0
        %v633 = vadd.f32 0.0, %v632
        %v634 = vpop.f32.mrf.mxu0
        %v635 = vpop.f32.mrf.mxu0
        %v636 = vadd.f32 0.0, %v635
        %v637 = vpop.f32.mrf.mxu0
        %638 = vmatprep.mubr.bf16.mxu0 %v387
        %639 = vmatmul.mubr.bf16.gmra.mxu0 %v386
        %v640 = vpop.f32.mrf.mxu0
        %v641 = vadd.f32 0.0, %v640
        %v642 = vpop.f32.mrf.mxu0
        %v643 = vpop.f32.mrf.mxu0
        %v644 = vadd.f32 0.0, %v643
        %v645 = vpop.f32.mrf.mxu0
        %646 = vmatprep.mubr.bf16.mxu0 %v389
        %647 = vmatmul.mubr.bf16.gmra.mxu0 %v388
        %v648 = vpop.f32.mrf.mxu0
        %v649 = vadd.f32 0.0, %v648
        %v650 = vpop.f32.mrf.mxu0
        %v651 = vpop.f32.mrf.mxu0
        %v652 = vadd.f32 0.0, %v651
        %v653 = vpop.f32.mrf.mxu0
        %654 = vmatprep.mubr.bf16.mxu0 %v391
        %655 = vmatmul.mubr.bf16.gmra.mxu0 %v390
        %v656 = vpop.f32.mrf.mxu0
        %v657 = vadd.f32 0.0, %v656
        %v658 = vpop.f32.mrf.mxu0
        %v659 = vpop.f32.mrf.mxu0
        %v660 = vadd.f32 0.0, %v659
        %v661 = vpop.f32.mrf.mxu0
        %662 = vmatprep.mubr.bf16.mxu0 %v393
        %663 = vmatmul.mubr.bf16.gmra.mxu0 %v392
        %v664 = vpop.f32.mrf.mxu0
        %v665 = vadd.f32 0.0, %v664
        %v666 = vpop.f32.mrf.mxu0
        %v667 = vpop.f32.mrf.mxu0
        %v668 = vadd.f32 0.0, %v667
        %v669 = vpop.f32.mrf.mxu0
        %670 = vmatprep.mubr.bf16.mxu0 %v395
        %671 = vmatmul.mubr.bf16.gmra.mxu0 %v394
        %v672 = vpop.f32.mrf.mxu0
        %v673 = vadd.f32 0.0, %v672
        %v674 = vpop.f32.mrf.mxu0
        %v675 = vpop.f32.mrf.mxu0
        %v676 = vadd.f32 0.0, %v675
        %v677 = vpop.f32.mrf.mxu0
        %678 = vmatprep.mubr.bf16.mxu0 %v397
        %679 = vmatmul.mubr.bf16.gmra.mxu0 %v396
        %v680 = vpop.f32.mrf.mxu0
        %v681 = vadd.f32 0.0, %v680
        %v682 = vpop.f32.mrf.mxu0
        %v683 = vpop.f32.mrf.mxu0
        %v684 = vadd.f32 0.0, %v683
        %v685 = vpop.f32.mrf.mxu0
        %686 = vdwg.mxu0
        %v687 = vpack.c.bf16 %v564, %v561
        %v688 = vpack.c.bf16 %v572, %v569
        %v689 = vpack.c.bf16 %v580, %v577
        %v690 = vpack.c.bf16 %v588, %v585
        %v691 = vpack.c.bf16 %v596, %v593
        %v692 = vpack.c.bf16 %v604, %v601
        %v693 = vpack.c.bf16 %v612, %v609
        %v694 = vpack.c.bf16 %v620, %v617
        %v695 = vpack.c.bf16 %v628, %v625
        %v696 = vpack.c.bf16 %v636, %v633
        %v697 = vpack.c.bf16 %v644, %v641
        %v698 = vpack.c.bf16 %v652, %v649
        %v699 = vpack.c.bf16 %v660, %v657
        %v700 = vpack.c.bf16 %v668, %v665
        %v701 = vpack.c.bf16 %v676, %v673
        %v702 = vpack.c.bf16 %v684, %v681
        %v719 = vunpack.c.l.b16 %v687
        %v720 = vunpack.c.h.b16 %v687
        %v721 = vunpack.c.l.b16 %v688
        %v722 = vunpack.c.h.b16 %v688
        %v723 = vunpack.c.l.b16 %v689
        %v724 = vunpack.c.h.b16 %v689
        %v725 = vunpack.c.l.b16 %v690
        %v726 = vunpack.c.h.b16 %v690
        %v727 = vunpack.c.l.b16 %v691
        %v728 = vunpack.c.h.b16 %v691
        %v729 = vunpack.c.l.b16 %v692
        %v730 = vunpack.c.h.b16 %v692
        %v731 = vunpack.c.l.b16 %v693
        %v732 = vunpack.c.h.b16 %v693
        %v733 = vunpack.c.l.b16 %v694
        %v734 = vunpack.c.h.b16 %v694
        %v735 = vunpack.c.l.b16 %v695
        %v736 = vunpack.c.h.b16 %v695
        %v737 = vunpack.c.l.b16 %v696
        %v738 = vunpack.c.h.b16 %v696
        %v739 = vunpack.c.l.b16 %v697
        %v740 = vunpack.c.h.b16 %v697
        %v741 = vunpack.c.l.b16 %v698
        %v742 = vunpack.c.h.b16 %v698
        %v743 = vunpack.c.l.b16 %v699
        %v744 = vunpack.c.h.b16 %v699
        %v745 = vunpack.c.l.b16 %v700
        %v746 = vunpack.c.h.b16 %v700
        %v747 = vunpack.c.l.b16 %v701
        %v748 = vunpack.c.h.b16 %v701
        %v749 = vunpack.c.l.b16 %v702
        %v750 = vunpack.c.h.b16 %v702
        %v751 = vpack.c.b16 %v719, %v719
        %v752 = vpack.c.b16 %v720, %v720
        %v753 = vpack.c.b16 %v721, %v721
        %v754 = vpack.c.b16 %v722, %v722
        %v755 = vpack.c.b16 %v723, %v723
        %v756 = vpack.c.b16 %v724, %v724
        %v757 = vpack.c.b16 %v725, %v725
        %v758 = vpack.c.b16 %v726, %v726
        %v759 = vpack.c.b16 %v727, %v727
        %v760 = vpack.c.b16 %v728, %v728
        %v761 = vpack.c.b16 %v729, %v729
        %v762 = vpack.c.b16 %v730, %v730
        %v763 = vpack.c.b16 %v731, %v731
        %v764 = vpack.c.b16 %v732, %v732
        %v765 = vpack.c.b16 %v733, %v733
        %v766 = vpack.c.b16 %v734, %v734
        %v767 = vpack.c.b16 %v735, %v735
        %v768 = vpack.c.b16 %v736, %v736
        %v769 = vpack.c.b16 %v737, %v737
        %v770 = vpack.c.b16 %v738, %v738
        %v771 = vpack.c.b16 %v739, %v739
        %v772 = vpack.c.b16 %v740, %v740
        %v773 = vpack.c.b16 %v741, %v741
        %v774 = vpack.c.b16 %v742, %v742
        %v775 = vpack.c.b16 %v743, %v743
        %v776 = vpack.c.b16 %v744, %v744
        %v777 = vpack.c.b16 %v745, %v745
        %v778 = vpack.c.b16 %v746, %v746
        %v779 = vpack.c.b16 %v747, %v747
        %v780 = vpack.c.b16 %v748, %v748
        %v781 = vpack.c.b16 %v749, %v749
        %v782 = vpack.c.b16 %v750, %v750
        %vm815 = vcmask 519168
        %816 = vst.msk [vmem:[%s203] sm:$0xf] %vm815, %v751
        %817 = vst.msk [vmem:[%s203 + $0x4] sm:$0xf] %vm815, %v752
        %818 = vst.msk [vmem:[%s203 + $0x8] sm:$0xf] %vm815, %v753
        %819 = vst.msk [vmem:[%s203 + $0xc] sm:$0xf] %vm815, %v754
        %820 = vst.msk [vmem:[%s203 + $0x10] sm:$0xf] %vm815, %v755
        %821 = vst.msk [vmem:[%s203 + $0x14] sm:$0xf] %vm815, %v756
        %822 = vst.msk [vmem:[%s203 + $0x18] sm:$0xf] %vm815, %v757
        %823 = vst.msk [vmem:[%s203 + $0x1c] sm:$0xf] %vm815, %v758
        %824 = vst.msk [vmem:[%s203 + $0x20] sm:$0xf] %vm815, %v759
        %825 = vst.msk [vmem:[%s203 + $0x24] sm:$0xf] %vm815, %v760
        %826 = vst.msk [vmem:[%s203 + $0x28] sm:$0xf] %vm815, %v761
        %827 = vst.msk [vmem:[%s203 + $0x2c] sm:$0xf] %vm815, %v762
        %828 = vst.msk [vmem:[%s203 + $0x30] sm:$0xf] %vm815, %v763
        %829 = vst.msk [vmem:[%s203 + $0x34] sm:$0xf] %vm815, %v764
        %830 = vst.msk [vmem:[%s203 + $0x38] sm:$0xf] %vm815, %v765
        %831 = vst.msk [vmem:[%s203 + $0x3c] sm:$0xf] %vm815, %v766
        %832 = vst.msk [vmem:[%s203 + $0x40] sm:$0xf] %vm815, %v767
        %833 = vst.msk [vmem:[%s203 + $0x44] sm:$0xf] %vm815, %v768
        %834 = vst.msk [vmem:[%s203 + $0x48] sm:$0xf] %vm815, %v769
        %835 = vst.msk [vmem:[%s203 + $0x4c] sm:$0xf] %vm815, %v770
        %836 = vst.msk [vmem:[%s203 + $0x50] sm:$0xf] %vm815, %v771
        %837 = vst.msk [vmem:[%s203 + $0x54] sm:$0xf] %vm815, %v772
        %838 = vst.msk [vmem:[%s203 + $0x58] sm:$0xf] %vm815, %v773
        %839 = vst.msk [vmem:[%s203 + $0x5c] sm:$0xf] %vm815, %v774
        %840 = vst.msk [vmem:[%s203 + $0x60] sm:$0xf] %vm815, %v775
        %841 = vst.msk [vmem:[%s203 + $0x64] sm:$0xf] %vm815, %v776
        %842 = vst.msk [vmem:[%s203 + $0x68] sm:$0xf] %vm815, %v777
        %843 = vst.msk [vmem:[%s203 + $0x6c] sm:$0xf] %vm815, %v778
        %844 = vst.msk [vmem:[%s203 + $0x70] sm:$0xf] %vm815, %v779
        %845 = vst.msk [vmem:[%s203 + $0x74] sm:$0xf] %vm815, %v780
        %846 = vst.msk [vmem:[%s203 + $0x78] sm:$0xf] %vm815, %v781
        %847 = vst.msk [vmem:[%s203 + $0x7c] sm:$0xf] %vm815, %v782
        %vm848 = vcmask 523264
        %v849 = vsel %vm848, %v561, 0.0
        %v850 = vsel %vm848, %v564, 0.0
        %v851 = vadd.f32 %v849, %v850
        %v852 = vsel %vm848, %v569, 0.0
        %v853 = vadd.f32 %v851, %v852
        %v854 = vsel %vm848, %v572, 0.0
        %v855 = vadd.f32 %v853, %v854
        %v856 = vsel %vm848, %v577, 0.0
        %v857 = vadd.f32 %v855, %v856
        %v858 = vsel %vm848, %v580, 0.0
        %v859 = vadd.f32 %v857, %v858
        %v860 = vsel %vm848, %v585, 0.0
        %v861 = vadd.f32 %v859, %v860
        %v862 = vsel %vm848, %v588, 0.0
        %v863 = vadd.f32 %v861, %v862
        %v864 = vsel %vm848, %v593, 0.0
        %v865 = vadd.f32 %v863, %v864
        %v866 = vsel %vm848, %v596, 0.0
        %v867 = vadd.f32 %v865, %v866
        %v868 = vsel %vm848, %v601, 0.0
        %v869 = vadd.f32 %v867, %v868
        %v870 = vsel %vm848, %v604, 0.0
        %v871 = vadd.f32 %v869, %v870
        %v872 = vsel %vm848, %v609, 0.0
        %v873 = vadd.f32 %v871, %v872
        %v874 = vsel %vm848, %v612, 0.0
        %v875 = vadd.f32 %v873, %v874
        %v876 = vsel %vm848, %v617, 0.0
        %v877 = vadd.f32 %v875, %v876
        %v878 = vsel %vm848, %v620, 0.0
        %v879 = vadd.f32 %v877, %v878
        %v880 = vsel %vm848, %v625, 0.0
        %v881 = vadd.f32 %v879, %v880
        %v882 = vsel %vm848, %v628, 0.0
        %v883 = vadd.f32 %v881, %v882
        %v884 = vsel %vm848, %v633, 0.0
        %v885 = vadd.f32 %v883, %v884
        %v886 = vsel %vm848, %v636, 0.0
        %v887 = vadd.f32 %v885, %v886
        %v888 = vsel %vm848, %v641, 0.0
        %v889 = vadd.f32 %v887, %v888
        %v890 = vsel %vm848, %v644, 0.0
        %v891 = vadd.f32 %v889, %v890
        %v892 = vsel %vm848, %v649, 0.0
        %v893 = vadd.f32 %v891, %v892
        %v894 = vsel %vm848, %v652, 0.0
        %v895 = vadd.f32 %v893, %v894
        %v896 = vsel %vm848, %v657, 0.0
        %v897 = vadd.f32 %v895, %v896
        %v898 = vsel %vm848, %v660, 0.0
        %v899 = vadd.f32 %v897, %v898
        %v900 = vsel %vm848, %v665, 0.0
        %v901 = vadd.f32 %v899, %v900
        %v902 = vsel %vm848, %v668, 0.0
        %v903 = vadd.f32 %v901, %v902
        %v904 = vsel %vm848, %v673, 0.0
        %v905 = vadd.f32 %v903, %v904
        %v906 = vsel %vm848, %v676, 0.0
        %v907 = vadd.f32 %v905, %v906
        %v908 = vsel %vm848, %v681, 0.0
        %v909 = vadd.f32 %v907, %v908
        %v910 = vsel %vm848, %v684, 0.0
        %v911 = vadd.f32 %v909, %v910
        %v912 = vrot.slane %v911, 4
        %v913 = vadd.f32 %v911, %v912
        %v914 = vrot.slane %v913, 2
        %v915 = vadd.f32 %v913, %v914
        %v916 = vrot.slane %v915, 1
        %v917 = vadd.f32 %v915, %v916
        %v918 = vmul.f32 %v561, %v561
        %v919 = vmul.f32 %v564, %v564
        %v920 = vmul.f32 %v569, %v569
        %v921 = vmul.f32 %v572, %v572
        %v922 = vmul.f32 %v577, %v577
        %v923 = vmul.f32 %v580, %v580
        %v924 = vmul.f32 %v585, %v585
        %v925 = vmul.f32 %v588, %v588
        %v926 = vmul.f32 %v593, %v593
        %v927 = vmul.f32 %v596, %v596
        %v928 = vmul.f32 %v601, %v601
        %v929 = vmul.f32 %v604, %v604
        %v930 = vmul.f32 %v609, %v609
        %v931 = vmul.f32 %v612, %v612
        %v932 = vmul.f32 %v617, %v617
        %v933 = vmul.f32 %v620, %v620
        %v934 = vmul.f32 %v625, %v625
        %v935 = vmul.f32 %v628, %v628
        %v936 = vmul.f32 %v633, %v633
        %v937 = vmul.f32 %v636, %v636
        %v938 = vmul.f32 %v641, %v641
        %v939 = vmul.f32 %v644, %v644
        %v940 = vmul.f32 %v649, %v649
        %v941 = vmul.f32 %v652, %v652
        %v942 = vmul.f32 %v657, %v657
        %v943 = vmul.f32 %v660, %v660
        %v944 = vmul.f32 %v665, %v665
        %v945 = vmul.f32 %v668, %v668
        %v946 = vmul.f32 %v673, %v673
        %v947 = vmul.f32 %v676, %v676
        %v948 = vmul.f32 %v681, %v681
        %v949 = vmul.f32 %v684, %v684
        %v950 = vsel %vm848, %v918, 0.0
        %v951 = vsel %vm848, %v919, 0.0
        %v952 = vadd.f32 %v950, %v951
        %v953 = vsel %vm848, %v920, 0.0
        %v954 = vadd.f32 %v952, %v953
        %v955 = vsel %vm848, %v921, 0.0
        %v956 = vadd.f32 %v954, %v955
        %v957 = vsel %vm848, %v922, 0.0
        %v958 = vadd.f32 %v956, %v957
        %v959 = vsel %vm848, %v923, 0.0
        %v960 = vadd.f32 %v958, %v959
        %v961 = vsel %vm848, %v924, 0.0
        %v962 = vadd.f32 %v960, %v961
        %v963 = vsel %vm848, %v925, 0.0
        %v964 = vadd.f32 %v962, %v963
        %v965 = vsel %vm848, %v926, 0.0
        %v966 = vadd.f32 %v964, %v965
        %v967 = vsel %vm848, %v927, 0.0
        %v968 = vadd.f32 %v966, %v967
        %v969 = vsel %vm848, %v928, 0.0
        %v970 = vadd.f32 %v968, %v969
        %v971 = vsel %vm848, %v929, 0.0
        %v972 = vadd.f32 %v970, %v971
        %v973 = vsel %vm848, %v930, 0.0
        %v974 = vadd.f32 %v972, %v973
        %v975 = vsel %vm848, %v931, 0.0
        %v976 = vadd.f32 %v974, %v975
        %v977 = vsel %vm848, %v932, 0.0
        %v978 = vadd.f32 %v976, %v977
        %v979 = vsel %vm848, %v933, 0.0
        %v980 = vadd.f32 %v978, %v979
        %v981 = vsel %vm848, %v934, 0.0
        %v982 = vadd.f32 %v980, %v981
        %v983 = vsel %vm848, %v935, 0.0
        %v984 = vadd.f32 %v982, %v983
        %v985 = vsel %vm848, %v936, 0.0
        %v986 = vadd.f32 %v984, %v985
        %v987 = vsel %vm848, %v937, 0.0
        %v988 = vadd.f32 %v986, %v987
        %v989 = vsel %vm848, %v938, 0.0
        %v990 = vadd.f32 %v988, %v989
        %v991 = vsel %vm848, %v939, 0.0
        %v992 = vadd.f32 %v990, %v991
        %v993 = vsel %vm848, %v940, 0.0
        %v994 = vadd.f32 %v992, %v993
        %v995 = vsel %vm848, %v941, 0.0
        %v996 = vadd.f32 %v994, %v995
        %v997 = vsel %vm848, %v942, 0.0
        %v998 = vadd.f32 %v996, %v997
        %v999 = vsel %vm848, %v943, 0.0
        %v1000 = vadd.f32 %v998, %v999
        %v1001 = vsel %vm848, %v944, 0.0
        %v1002 = vadd.f32 %v1000, %v1001
        %v1003 = vsel %vm848, %v945, 0.0
        %v1004 = vadd.f32 %v1002, %v1003
        %v1005 = vsel %vm848, %v946, 0.0
        %v1006 = vadd.f32 %v1004, %v1005
        %v1007 = vsel %vm848, %v947, 0.0
        %v1008 = vadd.f32 %v1006, %v1007
        %v1009 = vsel %vm848, %v948, 0.0
        %v1010 = vadd.f32 %v1008, %v1009
        %v1011 = vsel %vm848, %v949, 0.0
        %v1012 = vadd.f32 %v1010, %v1011
        %v1013 = vrot.slane %v1012, 4
        %v1014 = vadd.f32 %v1012, %v1013
        %v1015 = vrot.slane %v1014, 2
        %v1016 = vadd.f32 %v1014, %v1015
        %v1017 = vrot.slane %v1016, 1
        %v1018 = vadd.f32 %v1016, %v1017
        %v1019 = vlaneseq
        %v1020 = vshrl.u32 %v1019, 7
        %vm1021 = vcmp.eq.s32.totalorder %v1020, 0
        %vm1022 = vcmp.eq.s32.totalorder %v1020, 1
        %v1023 = vsel %vm1022, %v1018, 0.0
        %v1024 = vsel %vm1021, %v917, %v1023
        %1025 = vst.msk [vmem:[%s197] sm:$0xff] %vm848, %v1024
        %s1026 = smul.u32 32, %s21
        %p1027 = scmp.lt.s32.totalorder %s1026, 63
        %s1028 = scalar_select %p1027, %s1026, 63
        %s1029 = smul.addr %s1028, 4
        %s1030 = scalar_lea.vmem %s2, %s1029
        %s1031 = sand.u32 %s102, 1
        %s1032 = scalar_lea.sflag [#allocation4], %s1031
        %s1033 = sand.u32 %s102, 1
        %s1034 = smul.addr %s1033, 8
        %s1035 = scalar_lea.vmem [#allocation5], %s1034
        // Predicated region
        $region33: #{tpu_custom_call.1} parent=27 // pred_check
          %p1036 = pneg %p86
        $region34: #{tpu_custom_call.1} parent=27 // pred_check_branch
          %1038 = sbr.rel (%p1036) target = $region36
        $region35: #{tpu_custom_call.1} parent=27 // pred_region
          %s1039 = smul.u32 32, %s21
        $region36: #{tpu_custom_call.1} parent=27 // pred_fallthru
          _
        // Predicated region
        $region37: #{tpu_custom_call.1} parent=27 // pred_check
          %p1040 = pneg %p112
        $region38: #{tpu_custom_call.1} parent=27 // pred_check_branch
          %1042 = sbr.rel (%p1040) target = $region40
        $region39: #{tpu_custom_call.1} parent=27 // pred_region
          %s1044 = ssub.s32 128, 128
          %1045 = vsyncadd %s1032, %s1044
          %s1046 = smul.addr %s21, 128
          %s1047 = scalar_lea.hbm %s3, %s1046
          %s1049 = sshll.u32 %s1035, 4
          %s1050 = int_to_ptr.vmem [resolvable:$true] %s1049
          %1052 = dma.vmem_to_hbm [thread:$0]  %s1050, 128, %s1047, %s1032
        $region40: #{tpu_custom_call.1} parent=27 // pred_fallthru
          _
      $region28: #{tpu_custom_call.1} parent=5 // pred_fallthru
        _
      %p1053 = scmp.le.s32.totalorder 2, %s16
      // Predicated region
      $region41: #{tpu_custom_call.1} parent=5 // pred_check
        %p1054 = pneg %p1053
      $region42: #{tpu_custom_call.1} parent=5 // pred_check_branch
        %1056 = sbr.rel (%p1054) target = $region44
      $region43: #{tpu_custom_call.1} parent=5 // pred_region
        %s1057 = ssub.s32 %s16, 2
        // Predicated region
        $region45: #{tpu_custom_call.1} parent=43 // pred_check
          %p1058 = pneg %p92
        $region46: #{tpu_custom_call.1} parent=43 // pred_check_branch
          %1060 = sbr.rel (%p1058) target = $region48
        $region47: #{tpu_custom_call.1} parent=43 // pred_region
          %s1061 = smul.u32 32, %s22
          %p1062 = scmp.lt.s32.totalorder %s1061, 63
          %s1063 = scalar_select %p1062, %s1061, 63
          %s1064 = smul.addr %s1063, 4
          %s1065 = scalar_lea.vmem %s2, %s1064
        $region48: #{tpu_custom_call.1} parent=43 // pred_fallthru
          _
        // Predicated region
        $region49: #{tpu_custom_call.1} parent=43 // pred_check
          %p1066 = pneg %p118
        $region50: #{tpu_custom_call.1} parent=43 // pred_check_branch
          %1068 = sbr.rel (%p1066) target = $region52
        $region51: #{tpu_custom_call.1} parent=43 // pred_region
          %s1069 = sand.u32 %s103, 1
          %s1070 = scalar_lea.sflag [#allocation4], %s1069
          %s1071 = sand.u32 %s103, 1
          %s1072 = smul.addr %s1071, 8
          %s1073 = scalar_lea.vmem [#allocation5], %s1072
          %1074 = dma.done %s1070, 128
        $region52: #{tpu_custom_call.1} parent=43 // pred_fallthru
          _
      $region44: #{tpu_custom_call.1} parent=5 // pred_fallthru
        _
    $region6: #{tpu_custom_call.1} parent=1 // loop_footer
      %s20 = sadd.s32 1, %s16
    $region7: #{tpu_custom_call.1} parent=1 // loop_footer_branch
      %15 = sbr.rel target = $region3
    $region8: #{tpu_custom_call.1} parent=1 // loop_exit
      _
    %1075 = vsyncpa [#allocation3], 1
    %s1076 = scalar_lea.sflag [#allocation3], 1
    %1077 = vsyncpa %s1076, 1
    %1078 = vsyncpa [#allocation4], 1
    %s1079 = scalar_lea.sflag [#allocation4], 1
    %1080 = vsyncpa %s1079, 1

</llo_original>
